<compile_context>
chip_gen: v7x
topology: tpu7x:2x2x1
jax: 0.10.0
libtpu: 0.0.40
codegen_flags: <defaults>
</compile_context>

<pallas_src>
import jax
import jax.numpy as jnp
from jax.experimental import pallas as pl
from jax.experimental.pallas import tpu as pltpu


def _normalize_kernel(x_ref, scale_ref, bias_ref, o_ref):
    # x_ref:     (T_R, T_HW) tile of the flattened (N*C, H*W) image
    # scale_ref: (T_R, 1) f32 per-row 1/std
    # bias_ref:  (T_R, 1) f32 per-row -mean/std
    # Compute in f32; (T_R, 1) broadcasts natively over the lane axis.
    x = x_ref[...].astype(jnp.float32)
    o_ref[...] = (x * scale_ref[...] + bias_ref[...]).astype(o_ref.dtype)


def _round_up(x, m):
    return ((x + m - 1) // m) * m


def _round_down(x, m):
    return (x // m) * m


def _select_tiles(rows, hw, itemsize, *, block_budget, block_floor, min_steps):
    """Pick (t_r, t_hw). Prefers whole-row (fully contiguous) blocks."""
    sub = max(8, 32 // itemsize)      # dtype-aware sublane packing: f32->8, bf16->16, int8->32
    lane = 128
    row_bytes = hw * itemsize

    if sub * row_bytes <= block_budget:
        # Whole-row blocks: each tile is one contiguous HBM slab.
        t_hw = hw
        t_r = min(_round_up(rows, sub),
                  max(sub, _round_down(block_budget // row_bytes, sub)))
    else:
        # Even one sublane-group of full rows exceeds the budget: tile lanes.
        t_r = sub
        t_hw = _round_down(block_budget // (sub * itemsize), lane)
        t_hw = max(lane, min(t_hw, _round_up(hw, lane)))

    def steps(tr, thw):
        return pl.cdiv(rows, tr) * pl.cdiv(hw, thw)

    # Megacore guard (v7x: 2 TensorCores split the 'parallel' grid axes).
    # Shrink tiles to expose enough grid steps, but keep blocks >= ~1 MiB.
    while steps(t_r, t_hw) < min_steps:
        if t_r >= 2 * sub and (t_r // 2) * min(t_hw, hw) * itemsize >= block_floor:
            t_r = _round_up(t_r // 2, sub)
        elif t_hw >= 2 * lane and t_r * (t_hw // 2) * itemsize >= block_floor:
            t_hw = _round_up(t_hw // 2, lane)
        else:
            break

    return t_r, t_hw


def normalization(image, mean, std, *, block_budget_bytes=4 << 20,
                  block_floor_bytes=1 << 20, min_grid_steps=16):
    """image: (N, C, H, W) float; mean/std: (C,) float."""
    n, c, h, w = image.shape
    hw = h * w
    rows = n * c
    dtype = image.dtype
    itemsize = jnp.dtype(dtype).itemsize

    # Lane-dense 2D slab: rows = N*C (sublane axis), cols = H*W (lane axis).
    x2d = image.reshape(rows, hw)

    # Exact f32 precompute on the tiny (C,) params; kernel does only an FMA.
    # Kept in f32 (not image dtype) so bf16 images don't pick up extra rounding.
    # NOTE: std == 0 yields inf/nan, matching the PyTorch reference's divide.
    scale = 1.0 / std.astype(jnp.float32)
    bias = -mean.astype(jnp.float32) * scale
    scale_col = jnp.tile(scale, (n,)).reshape(rows, 1)
    bias_col = jnp.tile(bias, (n,)).reshape(rows, 1)

    t_r, t_hw = _select_tiles(rows, hw, itemsize,
                              block_budget=block_budget_bytes,
                              block_floor=block_floor_bytes,
                              min_steps=min_grid_steps)

    block_bytes = t_r * min(t_hw, hw) * itemsize
    # in + out, double-buffered, plus slack. Above v5e's 16 MiB scoped default,
    # comfortably under v7x's 64 MiB physical VMEM (usage is ~4x block_bytes).
    vmem_limit = int(min(64 << 20, max(32 << 20, 6 * block_bytes)))

    cost = pl.CostEstimate(
        flops=2 * rows * hw,
        transcendentals=0,
        bytes_accessed=2 * rows * hw * itemsize,
    )

    if t_hw >= hw:
        # Whole-row blocks: 1-D grid over rows, one contiguous DMA per tile.
        grid = (pl.cdiv(rows, t_r),)
        in_specs = [
            pl.BlockSpec((t_r, hw), lambda i: (i, 0)),
            pl.BlockSpec((t_r, 1), lambda i: (i, 0)),
            pl.BlockSpec((t_r, 1), lambda i: (i, 0)),
        ]
        out_specs = pl.BlockSpec((t_r, hw), lambda i: (i, 0))
        dim_sem = ("parallel",)
    else:
        grid = (pl.cdiv(rows, t_r), pl.cdiv(hw, t_hw))
        in_specs = [
            pl.BlockSpec((t_r, t_hw), lambda i, j: (i, j)),
            pl.BlockSpec((t_r, 1), lambda i, j: (i, 0)),
            pl.BlockSpec((t_r, 1), lambda i, j: (i, 0)),
        ]
        out_specs = pl.BlockSpec((t_r, t_hw), lambda i, j: (i, j))
        dim_sem = ("parallel", "parallel")

    out2d = pl.pallas_call(
        _normalize_kernel,
        out_shape=jax.ShapeDtypeStruct((rows, hw), dtype),
        grid_spec=pltpu.PrefetchScalarGridSpec(
            num_scalar_prefetch=0,
            grid=grid,
            in_specs=in_specs,
            out_specs=out_specs,
        ),
        compiler_params=pltpu.CompilerParams(
            dimension_semantics=dim_sem,
            vmem_limit_bytes=vmem_limit,
        ),
        cost_estimate=cost,
    )(x2d, scale_col, bias_col)

    return out2d.reshape(n, c, h, w)


if __name__ == "__main__":
    key = jax.random.PRNGKey(0)
    (k_img,) = jax.random.split(key, 1)

    N, C, H, W = 2, 4, 16, 16
    image = jax.random.normal(k_img, (N, C, H, W), dtype=jnp.float32)

    # Deterministic "module parameters" (per-channel mean/std), as in __init__.
    mean = jnp.array([0.485, 0.456, 0.406, 0.5], dtype=jnp.float32)
    std = jnp.array([0.229, 0.224, 0.225, 0.25], dtype=jnp.float32)

    out = normalization(image, mean, std)
    out = jax.block_until_ready(out)

    # Reference check (plain JAX, mirrors PyTorch broadcasting of (C,1,1)).
    ref = (image - mean.reshape(-1, 1, 1)) / std.reshape(-1, 1, 1)
    assert out.shape == (N, C, H, W)
    # Kernel uses x*(1/std) + (-mean/std) (FMA form) vs the reference's
    # subtract-then-divide; difference is a couple of ULPs.
    assert jnp.allclose(out, ref, atol=1e-5, rtol=1e-5)

    print("KERNEL_OK")
</pallas_src>

<mosaic_0001>
module attributes {stable_mosaic.version = 11 : i64} {
  func.func @_normalize_kernel(%arg0: i32, %arg1: memref<8x256xf32, #tpu.memory_space<vmem>>, %arg2: memref<8x1xf32, #tpu.memory_space<vmem>>, %arg3: memref<8x1xf32, #tpu.memory_space<vmem>>, %arg4: memref<8x256xf32, #tpu.memory_space<vmem>>) attributes {dimension_semantics = [#tpu.dimension_semantics<parallel>], iteration_bounds = array<i64: 1>, scalar_prefetch = 0 : i64, scratch_operands = 0 : i64, tpu.core_type = #tpu.core_type<tc>, window_params = [{transform_indices = @transform_0, window_bounds = array<i64: 8, 256>}, {transform_indices = @transform_1, window_bounds = array<i64: 8, 1>}, {transform_indices = @transform_2, window_bounds = array<i64: 8, 1>}, {transform_indices = @transform_3, window_bounds = array<i64: 8, 256>}]} {
    %c0 = arith.constant 0 : index
    %c0_0 = arith.constant 0 : index
    %0 = vector.load %arg1[%c0, %c0_0] : memref<8x256xf32, #tpu.memory_space<vmem>>, vector<8x256xf32>
    %c0_1 = arith.constant 0 : index
    %c0_2 = arith.constant 0 : index
    %1 = vector.load %arg2[%c0_1, %c0_2] : memref<8x1xf32, #tpu.memory_space<vmem>>, vector<8x1xf32>
    %2 = vector.broadcast %1 : vector<8x1xf32> to vector<8x256xf32>
    %3 = arith.mulf %0, %2 : vector<8x256xf32>
    %c0_3 = arith.constant 0 : index
    %c0_4 = arith.constant 0 : index
    %4 = vector.load %arg3[%c0_3, %c0_4] : memref<8x1xf32, #tpu.memory_space<vmem>>, vector<8x1xf32>
    %5 = vector.broadcast %4 : vector<8x1xf32> to vector<8x256xf32>
    %6 = arith.addf %3, %5 : vector<8x256xf32>
    %c0_5 = arith.constant 0 : index
    %c0_6 = arith.constant 0 : index
    %7 = vector.load %arg4[%c0_5, %c0_6] : memref<8x256xf32, #tpu.memory_space<vmem>>, vector<8x256xf32>
    tpu.vector_store %arg4[%c0_5, %c0_6], %6 {strides = array<i32>} : memref<8x256xf32, #tpu.memory_space<vmem>>, vector<8x256xf32>,
    return
  }
  func.func @transform_0(%arg0: i32) -> (i32, i32) {
    %c0_i32 = arith.constant 0 : i32
    %c0_i32_0 = arith.constant 0 : i32
    return %arg0, %c0_i32 : i32, i32
  }
  func.func @transform_1(%arg0: i32) -> (i32, i32) {
    %c0_i32 = arith.constant 0 : i32
    %c0_i32_0 = arith.constant 0 : i32
    return %arg0, %c0_i32 : i32, i32
  }
  func.func @transform_2(%arg0: i32) -> (i32, i32) {
    %c0_i32 = arith.constant 0 : i32
    %c0_i32_0 = arith.constant 0 : i32
    return %arg0, %c0_i32 : i32, i32
  }
  func.func @transform_3(%arg0: i32) -> (i32, i32) {
    %c0_i32 = arith.constant 0 : i32
    %c0_i32_0 = arith.constant 0 : i32
    return %arg0, %c0_i32 : i32, i32
  }
}

</mosaic_0001>

<llo_original>
// kernel: tpu_custom_call.1
$region0: #{tpu_custom_call.1}
  #allocation0 [shape = 'u32[]', space=smem, size = 0x4, offset = 0x4, fixed_abs, tag = 'smem constant byte address 0x4 - core index']
  #allocation1 [shape = 'u32[144,128]{1,0:T(1,128)}', space=vmem, size = 0x12000, scoped, tag = 'internal scratch']
  %s0 = inlined_call_operand.vmem [shape: f32[8,256], index: 0, kind: input, shape index: {}]
  %s1 = inlined_call_operand.vmem [shape: f32[8,1], index: 1, kind: input, shape index: {}]
  %s2 = inlined_call_operand.vmem [shape: f32[8,1], index: 2, kind: input, shape index: {}]
  %s3 = inlined_call_operand.hbm [shape: f32[8,256], index: 3, kind: output, shape index: {}]
  %s4 = sld [smem:[#allocation0]]
  $region22: #{tpu_custom_call.1} parent=0
    _
  %s6 = ssub.s32 1, %s4
  %s7 = scalar_select 0, %s6, %s4
  $region1: #{tpu_custom_call.1} parent=0
    #allocation2 [shape = 'u8[8192]{0}', space=vmem, size = 0x2000, scoped, tag = 'output window, operand 0, single buffered']
    #allocation3 [shape = 's32[1]{0}', space=sflag, size = 0x4, scoped, tag = 'scoped memory for tpu_custom_call.1']
    %8 = vsyncpa [#allocation3], 0
    // Predicated region
    $region2: #{tpu_custom_call.1} parent=1 // pred_check
      _
    $region3: #{tpu_custom_call.1} parent=1 // pred_check_branch
      %10 = sbr.rel (0) target = $region5
    $region4: #{tpu_custom_call.1} parent=1 // pred_region
      _
    $region5: #{tpu_custom_call.1} parent=1 // pred_fallthru
      _
    // Predicated region
    $region6: #{tpu_custom_call.1} parent=1 // pred_check
      _
    $region7: #{tpu_custom_call.1} parent=1 // pred_check_branch
      %12 = sbr.rel (0) target = $region9
    $region8: #{tpu_custom_call.1} parent=1 // pred_region
      _
    $region9: #{tpu_custom_call.1} parent=1 // pred_fallthru
      _
    // Predicated region
    $region10: #{tpu_custom_call.1} parent=1 // pred_check
      _
    $region11: #{tpu_custom_call.1} parent=1 // pred_check_branch
      %14 = sbr.rel (0) target = $region13
    $region12: #{tpu_custom_call.1} parent=1 // pred_region
      _
    $region13: #{tpu_custom_call.1} parent=1 // pred_fallthru
      _
    %v15 = vld [vmem:[%s0] sm:$0xff]
    %v16 = vld [vmem:[%s0 + $0x8] sm:$0xff]
    %v17 = vld [vmem:[%s1] sm:$0xff]
    %19 = vset.pattern.permute.xlu0 0
    %20 = vperm.xlu0 %19, %v17
    %v21 = vpop.permute.xlu0 %20
    %v23 = vmul.f32 %v15, %v21
    %v24 = vmul.f32 %v16, %v21
    %v25 = vld [vmem:[%s2] sm:$0xff]
    %27 = vset.pattern.permute.xlu0 0
    %28 = vperm.xlu0 %27, %v25
    %v29 = vpop.permute.xlu0 %28
    %v31 = vadd.f32 %v23, %v29
    %v32 = vadd.f32 %v24, %v29
    %33 = vst [vmem:[#allocation2] sm:$0xff] %v31
    %34 = vst [vmem:[#allocation2 + $0x8] sm:$0xff] %v32
    // Predicated region
    $region14: #{tpu_custom_call.1} parent=1 // pred_check
      _
    $region15: #{tpu_custom_call.1} parent=1 // pred_check_branch
      %36 = sbr.rel (0) target = $region17
    $region16: #{tpu_custom_call.1} parent=1 // pred_region
      %s38 = ssub.s32 256, 256
      %39 = vsyncadd [#allocation3], %s38
      %s41 = sshll.u32 [#allocation2], 4
      %s42 = int_to_ptr.vmem [resolvable:$true] %s41
      %44 = dma.vmem_to_hbm [thread:$0]  %s42, 256, %s3, [#allocation3]
    $region17: #{tpu_custom_call.1} parent=1 // pred_fallthru
      _
    // Predicated region
    $region18: #{tpu_custom_call.1} parent=1 // pred_check
      _
    $region19: #{tpu_custom_call.1} parent=1 // pred_check_branch
      %46 = sbr.rel (0) target = $region21
    $region20: #{tpu_custom_call.1} parent=1 // pred_region
      %47 = dma.done [#allocation3], 256
    $region21: #{tpu_custom_call.1} parent=1 // pred_fallthru
      _
    %48 = vsyncpa [#allocation3], 1

</llo_original>
